<compile_context>
chip_gen: v6e
topology: v6e:2x2x1
jax: 0.10.0
libtpu: 0.0.40
codegen_flags: <defaults>
</compile_context>

<pallas_src>
import functools

import jax
import jax.numpy as jnp
from jax import lax
from jax.experimental import pallas as pl
from jax.experimental.pallas import tpu as pltpu


def _round_up(n, m):
    return ((n + m - 1) // m) * m


def _baseline_kernel(ids_ref, e1_ref, b1_ref, w2_ref, b2_ref, w3_ref, b3_ref,
                     out_ref, *, inv_s, seq_len):
    # ids_ref: (TB, S) int32 token ids
    # e1_ref : (V_pad, H_pad) f32  == pad(embedding @ W1.T)   (pre-folded)
    # b1_ref : (1, H_pad)   w2_ref: (H_pad, H_pad)   b2_ref: (1, H_pad)
    # w3_ref : (1, H_pad)   b3_ref: (1, 1)
    # out_ref: (1, 1, TB) f32 lane-dense logits for this batch tile
    ids = ids_ref[...]                                     # (TB, S)
    tb = ids.shape[0]
    v_pad = e1_ref.shape[0]

    # 2-D token histogram (gather-as-matmul weights): one lane iota reused for
    # every token; int32 accumulation, single f32 conversion at the end.
    iota_v = lax.broadcasted_iota(jnp.int32, (tb, v_pad), 1)   # (TB, V_pad)
    counts = jnp.zeros((tb, v_pad), jnp.int32)
    for s in range(seq_len):            # S is small & static -> fully unrolled
        counts = counts + (iota_v == ids[:, s:s + 1]).astype(jnp.int32)
    mean_w = counts.astype(jnp.float32) * inv_s                # (TB, V_pad)

    # fc1 (embedding pre-folded into E1) + relu
    h1 = jnp.dot(mean_w, e1_ref[...],
                 preferred_element_type=jnp.float32) + b1_ref[...]
    h1 = jnp.maximum(h1, 0.0)
    # fc2 + relu
    h2 = jnp.dot(h1, w2_ref[...],
                 preferred_element_type=jnp.float32) + b2_ref[...]
    h2 = jnp.maximum(h2, 0.0)
    # fc3: only one real output column -> contract H against the single w3 row
    # (q @ k^T style), logits land lane-dense as (1, TB); no padded-N matmul,
    # no transpose of a logit column.
    logits = lax.dot_general(w3_ref[...], h2, (((1,), (1,)), ((), ())),
                             preferred_element_type=jnp.float32)
    logits = logits + b3_ref[...]                              # (1, TB)
    out_ref[...] = logits.reshape(1, 1, tb)


def prepare_params(embedding, w1, b1, w2, b2, w3, b3):
    """One-time setup: fold embedding@W1.T, transpose, and zero-pad weights.

    embedding: (V, 300) f32 frozen table
    w1,b1: torch layout (150,300),(150,)  w2,b2: (150,150),(150,)  w3,b3: (1,150),(1,)
    """
    embedding = jnp.asarray(embedding, jnp.float32)
    w1 = jnp.asarray(w1, jnp.float32)
    w2 = jnp.asarray(w2, jnp.float32)
    w3 = jnp.asarray(w3, jnp.float32)
    b1 = jnp.asarray(b1, jnp.float32)
    b2 = jnp.asarray(b2, jnp.float32)
    b3 = jnp.asarray(b3, jnp.float32)

    V, _ = embedding.shape
    H = w1.shape[0]
    out_dim = w3.shape[0]

    V_pad = _round_up(V, 128)
    H_pad = _round_up(H, 128)          # 150 -> 256

    e1 = embedding @ w1.T              # (V, H) — frozen, computed once
    e1_p = jnp.zeros((V_pad, H_pad), jnp.float32).at[:V, :H].set(e1)
    b1_p = jnp.zeros((1, H_pad), jnp.float32).at[0, :H].set(b1)
    w2_p = jnp.zeros((H_pad, H_pad), jnp.float32).at[:H, :H].set(w2.T)
    b2_p = jnp.zeros((1, H_pad), jnp.float32).at[0, :H].set(b2)
    w3_p = jnp.zeros((1, H_pad), jnp.float32).at[:out_dim, :H].set(w3)
    b3_p = jnp.asarray(b3, jnp.float32).reshape(1, 1)
    return dict(e1=e1_p, b1=b1_p, w2=w2_p, b2=b2_p, w3=w3_p, b3=b3_p)


def baseline_forward_prepared(x, params, *, block_b=1024):
    """Forward pass. x: (B, S) int32 token ids; params from prepare_params."""
    B, S = x.shape
    e1, b1 = params["e1"], params["b1"]
    w2, b2 = params["w2"], params["b2"]
    w3, b3 = params["w3"], params["b3"]
    V_pad, H_pad = e1.shape

    # Batch tile: multiple of 8 sublanes, large default to amortize per-step
    # pipeline overhead.
    B8 = _round_up(B, 8)
    TB = _round_up(min(block_b, B8), 8)
    # v7x has 2 TensorCores: keep >=2 "parallel" grid steps when the batch is
    # large enough that splitting adds negligible padding.
    if TB == B8 and B8 >= 512:
        TB = _round_up(pl.cdiv(B8, 2), 8)
    B_pad = _round_up(B, TB)
    num_tiles = B_pad // TB

    x_pad = x.astype(jnp.int32)
    if B_pad != B:
        x_pad = jnp.pad(x_pad, ((0, B_pad - B), (0, 0)))   # pad with token 0

    kernel = functools.partial(_baseline_kernel, inv_s=1.0 / S, seq_len=S)
    resident = lambda shape: pl.BlockSpec(shape, lambda i: (0, 0))

    out = pl.pallas_call(
        kernel,
        out_shape=jax.ShapeDtypeStruct((num_tiles, 1, TB), jnp.float32),
        grid_spec=pltpu.PrefetchScalarGridSpec(
            num_scalar_prefetch=0,
            grid=(num_tiles,),
            in_specs=[
                pl.BlockSpec((TB, S), lambda i: (i, 0)),    # streamed ids
                resident((V_pad, H_pad)),                   # E1 (VMEM-resident)
                resident((1, H_pad)),                       # b1
                resident((H_pad, H_pad)),                   # W2^T
                resident((1, H_pad)),                       # b2
                resident((1, H_pad)),                       # w3 row
                resident((1, 1)),                           # b3
            ],
            out_specs=pl.BlockSpec((1, 1, TB), lambda i: (i, 0, 0)),
        ),
        compiler_params=pltpu.CompilerParams(
            dimension_semantics=("parallel",)),
    )(x_pad, e1, b1, w2, b2, w3, b3)

    return out.reshape(-1)[:B][:, None]                     # (B, 1) logits


def baseline_forward(x, embedding, w1, b1, w2, b2, w3, b3):
    # Convenience wrapper; in production hoist prepare_params() to setup.
    return baseline_forward_prepared(
        x, prepare_params(embedding, w1, b1, w2, b2, w3, b3))


def predict(x, params):
    logits = baseline_forward_prepared(x, params)
    return jnp.round(jax.nn.sigmoid(logits)).astype(jnp.int32).squeeze(-1)


def _reference(x, embedding, w1, b1, w2, b2, w3, b3):
    emb_x = jnp.take(embedding, x, axis=0)
    y = jnp.mean(emb_x, axis=1)
    y = jnp.maximum(y @ w1.T + b1, 0.0)
    y = jnp.maximum(y @ w2.T + b2, 0.0)
    return y @ w3.T + b3


if __name__ == "__main__":
    key = jax.random.PRNGKey(0)
    k_emb, k_x, k_x2, k_w1, k_b1, k_w2, k_b2, k_w3, k_b3 = jax.random.split(key, 9)

    V, D, H = 32, 300, 150           # vocab, embedding dim, hidden dim
    B, S = 4, 8                      # batch, sequence length

    embedding = jax.random.normal(k_emb, (V, D), dtype=jnp.float32)
    embedding = embedding.at[0].set(0.0)    # padding index row

    x = jax.random.randint(k_x, (B, S), 0, V, dtype=jnp.int32)

    # Linear params in PyTorch layout (out_features, in_features).
    w1 = jax.random.normal(k_w1, (H, D), dtype=jnp.float32) * 0.05
    b1 = jax.random.normal(k_b1, (H,), dtype=jnp.float32) * 0.05
    w2 = jax.random.normal(k_w2, (H, H), dtype=jnp.float32) * 0.05
    b2 = jax.random.normal(k_b2, (H,), dtype=jnp.float32) * 0.05
    w3 = jax.random.normal(k_w3, (1, H), dtype=jnp.float32) * 0.05
    b3 = jax.random.normal(k_b3, (1,), dtype=jnp.float32) * 0.05

    params = prepare_params(embedding, w1, b1, w2, b2, w3, b3)
    fwd = jax.jit(baseline_forward_prepared, static_argnames=("block_b",))

    # --- Test 1: small batch, single tile ---
    out = jax.block_until_ready(fwd(x, params))
    ref = _reference(x, embedding, w1, b1, w2, b2, w3, b3)
    assert out.shape == (B, 1)
    assert jnp.allclose(out, ref, atol=1e-4, rtol=1e-4), (
        float(jnp.max(jnp.abs(out - ref))))

    # --- Test 2: multi-tile grid with batch padding (exercise lane-dense
    # (1, TB) output path across several grid steps) ---
    B2 = 20
    x2 = jax.random.randint(k_x2, (B2, S), 0, V, dtype=jnp.int32)
    out2 = jax.block_until_ready(fwd(x2, params, block_b=8))
    ref2 = _reference(x2, embedding, w1, b1, w2, b2, w3, b3)
    assert out2.shape == (B2, 1)
    assert jnp.allclose(out2, ref2, atol=1e-4, rtol=1e-4), (
        float(jnp.max(jnp.abs(out2 - ref2))))

    preds = jax.block_until_ready(predict(x, params))
    assert preds.shape == (B,)

    print("KERNEL_OK")
</pallas_src>

<mosaic_0001>
module attributes {stable_mosaic.version = 11 : i64} {
  func.func @_baseline_kernel(%arg0: i32, %arg1: memref<8x8xi32, #tpu.memory_space<vmem>>, %arg2: memref<128x256xf32, #tpu.memory_space<vmem>>, %arg3: memref<1x256xf32, #tpu.memory_space<vmem>>, %arg4: memref<256x256xf32, #tpu.memory_space<vmem>>, %arg5: memref<1x256xf32, #tpu.memory_space<vmem>>, %arg6: memref<1x256xf32, #tpu.memory_space<vmem>>, %arg7: memref<1x1xf32, #tpu.memory_space<vmem>>, %arg8: memref<1x1x8xf32, #tpu.memory_space<vmem>>) attributes {dimension_semantics = [#tpu.dimension_semantics<parallel>], iteration_bounds = array<i64: 1>, scalar_prefetch = 0 : i64, scratch_operands = 0 : i64, tpu.core_type = #tpu.core_type<tc>, window_params = [{transform_indices = @transform_0, window_bounds = array<i64: 8, 8>}, {pipeline_mode = #tpu.pipeline_mode<synchronous>, transform_indices = @transform_1, window_bounds = array<i64: 128, 256>}, {pipeline_mode = #tpu.pipeline_mode<synchronous>, transform_indices = @transform_2, window_bounds = array<i64: 1, 256>}, {pipeline_mode = #tpu.pipeline_mode<synchronous>, transform_indices = @transform_3, window_bounds = array<i64: 256, 256>}, {pipeline_mode = #tpu.pipeline_mode<synchronous>, transform_indices = @transform_4, window_bounds = array<i64: 1, 256>}, {pipeline_mode = #tpu.pipeline_mode<synchronous>, transform_indices = @transform_5, window_bounds = array<i64: 1, 256>}, {pipeline_mode = #tpu.pipeline_mode<synchronous>, transform_indices = @transform_6, window_bounds = array<i64: 1, 1>}, {transform_indices = @transform_7, window_bounds = array<i64: 1, 1, 8>}]} {
    %c0 = arith.constant 0 : index
    %c0_0 = arith.constant 0 : index
    %0 = vector.load %arg1[%c0, %c0_0] : memref<8x8xi32, #tpu.memory_space<vmem>>, vector<8x8xi32>
    %1 = tpu.iota {dimensions = array<i32: 1>} : vector<8x128xi32>
    %c0_i32 = arith.constant 0 : i32
    %2 = vector.broadcast %c0_i32 : i32 to vector<8x128xi32>
    %3 = vector.extract_strided_slice %0 {offsets = [0, 0], sizes = [8, 1], strides = [1, 1]} : vector<8x8xi32> to vector<8x1xi32>
    %4 = vector.broadcast %3 : vector<8x1xi32> to vector<8x128xi32>
    %5 = arith.cmpi eq, %1, %4 : vector<8x128xi32>
    %6 = arith.extui %5 : vector<8x128xi1> to vector<8x128xi32>
    %7 = arith.addi %2, %6 : vector<8x128xi32>
    %8 = vector.extract_strided_slice %0 {offsets = [0, 1], sizes = [8, 1], strides = [1, 1]} : vector<8x8xi32> to vector<8x1xi32>
    %9 = vector.broadcast %8 : vector<8x1xi32> to vector<8x128xi32>
    %10 = arith.cmpi eq, %1, %9 : vector<8x128xi32>
    %11 = arith.extui %10 : vector<8x128xi1> to vector<8x128xi32>
    %12 = arith.addi %7, %11 : vector<8x128xi32>
    %13 = vector.extract_strided_slice %0 {offsets = [0, 2], sizes = [8, 1], strides = [1, 1]} : vector<8x8xi32> to vector<8x1xi32>
    %14 = vector.broadcast %13 : vector<8x1xi32> to vector<8x128xi32>
    %15 = arith.cmpi eq, %1, %14 : vector<8x128xi32>
    %16 = arith.extui %15 : vector<8x128xi1> to vector<8x128xi32>
    %17 = arith.addi %12, %16 : vector<8x128xi32>
    %18 = vector.extract_strided_slice %0 {offsets = [0, 3], sizes = [8, 1], strides = [1, 1]} : vector<8x8xi32> to vector<8x1xi32>
    %19 = vector.broadcast %18 : vector<8x1xi32> to vector<8x128xi32>
    %20 = arith.cmpi eq, %1, %19 : vector<8x128xi32>
    %21 = arith.extui %20 : vector<8x128xi1> to vector<8x128xi32>
    %22 = arith.addi %17, %21 : vector<8x128xi32>
    %23 = vector.extract_strided_slice %0 {offsets = [0, 4], sizes = [8, 1], strides = [1, 1]} : vector<8x8xi32> to vector<8x1xi32>
    %24 = vector.broadcast %23 : vector<8x1xi32> to vector<8x128xi32>
    %25 = arith.cmpi eq, %1, %24 : vector<8x128xi32>
    %26 = arith.extui %25 : vector<8x128xi1> to vector<8x128xi32>
    %27 = arith.addi %22, %26 : vector<8x128xi32>
    %28 = vector.extract_strided_slice %0 {offsets = [0, 5], sizes = [8, 1], strides = [1, 1]} : vector<8x8xi32> to vector<8x1xi32>
    %29 = vector.broadcast %28 : vector<8x1xi32> to vector<8x128xi32>
    %30 = arith.cmpi eq, %1, %29 : vector<8x128xi32>
    %31 = arith.extui %30 : vector<8x128xi1> to vector<8x128xi32>
    %32 = arith.addi %27, %31 : vector<8x128xi32>
    %33 = vector.extract_strided_slice %0 {offsets = [0, 6], sizes = [8, 1], strides = [1, 1]} : vector<8x8xi32> to vector<8x1xi32>
    %34 = vector.broadcast %33 : vector<8x1xi32> to vector<8x128xi32>
    %35 = arith.cmpi eq, %1, %34 : vector<8x128xi32>
    %36 = arith.extui %35 : vector<8x128xi1> to vector<8x128xi32>
    %37 = arith.addi %32, %36 : vector<8x128xi32>
    %38 = vector.extract_strided_slice %0 {offsets = [0, 7], sizes = [8, 1], strides = [1, 1]} : vector<8x8xi32> to vector<8x1xi32>
    %39 = vector.broadcast %38 : vector<8x1xi32> to vector<8x128xi32>
    %40 = arith.cmpi eq, %1, %39 : vector<8x128xi32>
    %41 = arith.extui %40 : vector<8x128xi1> to vector<8x128xi32>
    %42 = arith.addi %37, %41 : vector<8x128xi32>
    %43 = arith.sitofp %42 : vector<8x128xi32> to vector<8x128xf32>
    %cst = arith.constant 1.250000e-01 : f32
    %44 = vector.broadcast %cst : f32 to vector<8x128xf32>
    %45 = arith.mulf %43, %44 : vector<8x128xf32>
    %c0_1 = arith.constant 0 : index
    %c0_2 = arith.constant 0 : index
    %46 = vector.load %arg2[%c0_1, %c0_2] : memref<128x256xf32, #tpu.memory_space<vmem>>, vector<128x256xf32>
    %cst_3 = arith.constant dense<0.000000e+00> : vector<8x256xf32>
    %47 = tpu.matmul %45, %46, %cst_3 {dimension_numbers = #tpu.dot_dimension_numbers<[1], [0], [0], [1], [0, 0, 1, 1], [], []>} : vector<8x128xf32>, vector<128x256xf32>, vector<8x256xf32> -> vector<8x256xf32>
    %c0_4 = arith.constant 0 : index
    %c0_5 = arith.constant 0 : index
    %48 = vector.load %arg3[%c0_4, %c0_5] : memref<1x256xf32, #tpu.memory_space<vmem>>, vector<1x256xf32>
    %49 = vector.broadcast %48 : vector<1x256xf32> to vector<8x256xf32>
    %50 = arith.addf %47, %49 : vector<8x256xf32>
    %cst_6 = arith.constant 0.000000e+00 : f32
    %51 = vector.broadcast %cst_6 : f32 to vector<8x256xf32>
    %52 = arith.maximumf %50, %51 : vector<8x256xf32>
    %c0_7 = arith.constant 0 : index
    %c0_8 = arith.constant 0 : index
    %53 = vector.load %arg4[%c0_7, %c0_8] : memref<256x256xf32, #tpu.memory_space<vmem>>, vector<256x256xf32>
    %cst_9 = arith.constant dense<0.000000e+00> : vector<8x256xf32>
    %54 = tpu.matmul %52, %53, %cst_9 {dimension_numbers = #tpu.dot_dimension_numbers<[1], [0], [0], [1], [0, 0, 1, 1], [], []>} : vector<8x256xf32>, vector<256x256xf32>, vector<8x256xf32> -> vector<8x256xf32>
    %c0_10 = arith.constant 0 : index
    %c0_11 = arith.constant 0 : index
    %55 = vector.load %arg5[%c0_10, %c0_11] : memref<1x256xf32, #tpu.memory_space<vmem>>, vector<1x256xf32>
    %56 = vector.broadcast %55 : vector<1x256xf32> to vector<8x256xf32>
    %57 = arith.addf %54, %56 : vector<8x256xf32>
    %cst_12 = arith.constant 0.000000e+00 : f32
    %58 = vector.broadcast %cst_12 : f32 to vector<8x256xf32>
    %59 = arith.maximumf %57, %58 : vector<8x256xf32>
    %c0_13 = arith.constant 0 : index
    %c0_14 = arith.constant 0 : index
    %60 = vector.load %arg6[%c0_13, %c0_14] : memref<1x256xf32, #tpu.memory_space<vmem>>, vector<1x256xf32>
    %cst_15 = arith.constant dense<0.000000e+00> : vector<1x8xf32>
    %61 = tpu.matmul %60, %59, %cst_15 {dimension_numbers = #tpu.dot_dimension_numbers<[1], [1], [0], [0], [0, 0, 1, 0], [], []>} : vector<1x256xf32>, vector<8x256xf32>, vector<1x8xf32> -> vector<1x8xf32>
    %c0_16 = arith.constant 0 : index
    %c0_17 = arith.constant 0 : index
    %62 = vector.load %arg7[%c0_16, %c0_17] : memref<1x1xf32, #tpu.memory_space<vmem>>, vector<1x1xf32>
    %63 = vector.broadcast %62 : vector<1x1xf32> to vector<1x8xf32>
    %64 = arith.addf %61, %63 : vector<1x8xf32>
    %65 = vector.shape_cast %64 : vector<1x8xf32> to vector<1x1x8xf32>
    %c0_18 = arith.constant 0 : index
    %c0_19 = arith.constant 0 : index
    %c0_20 = arith.constant 0 : index
    %66 = vector.load %arg8[%c0_18, %c0_19, %c0_20] : memref<1x1x8xf32, #tpu.memory_space<vmem>>, vector<1x1x8xf32>
    tpu.vector_store %arg8[%c0_18, %c0_19, %c0_20], %65 {strides = array<i32>} : memref<1x1x8xf32, #tpu.memory_space<vmem>>, vector<1x1x8xf32>,
    return
  }
  func.func @transform_0(%arg0: i32) -> (i32, i32) {
    %c0_i32 = arith.constant 0 : i32
    %c0_i32_0 = arith.constant 0 : i32
    return %arg0, %c0_i32 : i32, i32
  }
  func.func @transform_1(%arg0: i32) -> (i32, i32) {
    %c0_i32 = arith.constant 0 : i32
    %c0_i32_0 = arith.constant 0 : i32
    %c0_i32_1 = arith.constant 0 : i32
    return %c0_i32, %c0_i32_0 : i32, i32
  }
  func.func @transform_2(%arg0: i32) -> (i32, i32) {
    %c0_i32 = arith.constant 0 : i32
    %c0_i32_0 = arith.constant 0 : i32
    %c0_i32_1 = arith.constant 0 : i32
    return %c0_i32, %c0_i32_0 : i32, i32
  }
  func.func @transform_3(%arg0: i32) -> (i32, i32) {
    %c0_i32 = arith.constant 0 : i32
    %c0_i32_0 = arith.constant 0 : i32
    %c0_i32_1 = arith.constant 0 : i32
    return %c0_i32, %c0_i32_0 : i32, i32
  }
  func.func @transform_4(%arg0: i32) -> (i32, i32) {
    %c0_i32 = arith.constant 0 : i32
    %c0_i32_0 = arith.constant 0 : i32
    %c0_i32_1 = arith.constant 0 : i32
    return %c0_i32, %c0_i32_0 : i32, i32
  }
  func.func @transform_5(%arg0: i32) -> (i32, i32) {
    %c0_i32 = arith.constant 0 : i32
    %c0_i32_0 = arith.constant 0 : i32
    %c0_i32_1 = arith.constant 0 : i32
    return %c0_i32, %c0_i32_0 : i32, i32
  }
  func.func @transform_6(%arg0: i32) -> (i32, i32) {
    %c0_i32 = arith.constant 0 : i32
    %c0_i32_0 = arith.constant 0 : i32
    %c0_i32_1 = arith.constant 0 : i32
    return %c0_i32, %c0_i32_0 : i32, i32
  }
  func.func @transform_7(%arg0: i32) -> (i32, i32, i32) {
    %c0_i32 = arith.constant 0 : i32
    %c0_i32_0 = arith.constant 0 : i32
    %c0_i32_1 = arith.constant 0 : i32
    return %arg0, %c0_i32, %c0_i32_0 : i32, i32, i32
  }
}

</mosaic_0001>

<llo_original>
// kernel: baseline_forward_prepared.1
$region0: #{baseline_forward_prepared.1}
  #allocation0 [shape = 'u32[]', space=smem, size = 0x4, offset = 0x4, fixed_abs, tag = 'smem constant byte address 0x4 - core index']
  #allocation1 [shape = 'u32[144,128]{1,0:T(1,128)}', space=vmem, size = 0x12000, scoped, tag = 'internal scratch']
  #allocation2 [shape = 'f32[1,1]{1,0:T(1,128)S(1)}', space=vmem, size = 0x200, scoped, tag = 'scoped memory for baseline_forward_prepared.1']
  %s0 = inlined_call_operand.vmem [shape: s32[8,8], index: 0, kind: input, shape index: {}]
  %s1 = inlined_call_operand.hbm [shape: f32[128,256], index: 1, kind: input, shape index: {}]
  %s2 = inlined_call_operand.vmem [shape: f32[1,256], index: 2, kind: input, shape index: {}]
  %s3 = inlined_call_operand.hbm [shape: f32[256,256], index: 3, kind: input, shape index: {}]
  %s4 = inlined_call_operand.vmem [shape: f32[1,256], index: 4, kind: input, shape index: {}]
  %s5 = inlined_call_operand.vmem [shape: f32[1,256], index: 5, kind: input, shape index: {}]
  %s6 = inlined_call_operand.<no memory space> [shape: f32[1,1], index: 6, kind: input, shape index: {}]
  %s7 = inlined_call_operand.vmem [shape: f32[1,1,8], index: 7, kind: output, shape index: {}]
  %s8 = sld [smem:[#allocation0]]
  $region46: #{baseline_forward_prepared.1} parent=0
    _
  %s10 = ssub.s32 1, %s8
  %s11 = scalar_select 0, %s10, %s8
  %v12 = vstv %s6
  %13 = vst [vmem:[#allocation2] sm:$0x1] %v12
  $region1: #{baseline_forward_prepared.1} parent=0
    #allocation3 [shape = 'u8[131072]{0}', space=vmem, size = 0x20000, scoped, tag = 'input window, operand 1, single buffered']
    #allocation4 [shape = 's32[1]{0}', space=sflag, size = 0x4, scoped, tag = 'scoped memory for baseline_forward_prepared.1']
    #allocation5 [shape = 'u8[262144]{0}', space=vmem, size = 0x40000, scoped, tag = 'input window, operand 3, single buffered']
    #allocation6 [shape = 's32[1]{0}', space=sflag, size = 0x4, scoped, tag = 'scoped memory for baseline_forward_prepared.1']
    %14 = vsyncpa [#allocation4], 0
    %15 = vsyncpa [#allocation6], 0
    // Predicated region
    $region2: #{baseline_forward_prepared.1} parent=1 // pred_check
      _
    $region3: #{baseline_forward_prepared.1} parent=1 // pred_check_branch
      %17 = sbr.rel (0) target = $region5
    $region4: #{baseline_forward_prepared.1} parent=1 // pred_region
      _
    $region5: #{baseline_forward_prepared.1} parent=1 // pred_fallthru
      _
    // Predicated region
    $region6: #{baseline_forward_prepared.1} parent=1 // pred_check
      _
    $region7: #{baseline_forward_prepared.1} parent=1 // pred_check_branch
      %19 = sbr.rel (0) target = $region9
    $region8: #{baseline_forward_prepared.1} parent=1 // pred_region
      %s21 = ssub.s32 4096, 4096
      %22 = vsyncadd [#allocation4], %s21
      %s23 = sshll.u32 [#allocation3], 4
      %s24 = int_to_ptr.vmem [resolvable:$true] %s23
      %29 = dma.hbm_to_vmem [thread:$0]  %s1, 4096, %s24, [#allocation4], 256, 256, 16
    $region9: #{baseline_forward_prepared.1} parent=1 // pred_fallthru
      _
    // Predicated region
    $region10: #{baseline_forward_prepared.1} parent=1 // pred_check
      _
    $region11: #{baseline_forward_prepared.1} parent=1 // pred_check_branch
      %31 = sbr.rel (0) target = $region13
    $region12: #{baseline_forward_prepared.1} parent=1 // pred_region
      _
    $region13: #{baseline_forward_prepared.1} parent=1 // pred_fallthru
      _
    // Predicated region
    $region14: #{baseline_forward_prepared.1} parent=1 // pred_check
      _
    $region15: #{baseline_forward_prepared.1} parent=1 // pred_check_branch
      %33 = sbr.rel (0) target = $region17
    $region16: #{baseline_forward_prepared.1} parent=1 // pred_region
      %s35 = ssub.s32 8192, 8192
      %36 = vsyncadd [#allocation6], %s35
      %s37 = sshll.u32 [#allocation5], 4
      %s38 = int_to_ptr.vmem [resolvable:$true] %s37
      %43 = dma.hbm_to_vmem [thread:$0]  %s3, 8192, %s38, [#allocation6], 256, 256, 16
    $region17: #{baseline_forward_prepared.1} parent=1 // pred_fallthru
      _
    // Predicated region
    $region18: #{baseline_forward_prepared.1} parent=1 // pred_check
      _
    $region19: #{baseline_forward_prepared.1} parent=1 // pred_check_branch
      %45 = sbr.rel (0) target = $region21
    $region20: #{baseline_forward_prepared.1} parent=1 // pred_region
      _
    $region21: #{baseline_forward_prepared.1} parent=1 // pred_fallthru
      _
    // Predicated region
    $region22: #{baseline_forward_prepared.1} parent=1 // pred_check
      _
    $region23: #{baseline_forward_prepared.1} parent=1 // pred_check_branch
      %47 = sbr.rel (0) target = $region25
    $region24: #{baseline_forward_prepared.1} parent=1 // pred_region
      _
    $region25: #{baseline_forward_prepared.1} parent=1 // pred_fallthru
      _
    // Predicated region
    $region26: #{baseline_forward_prepared.1} parent=1 // pred_check
      _
    $region27: #{baseline_forward_prepared.1} parent=1 // pred_check_branch
      %49 = sbr.rel (0) target = $region29
    $region28: #{baseline_forward_prepared.1} parent=1 // pred_region
      _
    $region29: #{baseline_forward_prepared.1} parent=1 // pred_fallthru
      _
    // Predicated region
    $region30: #{baseline_forward_prepared.1} parent=1 // pred_check
      _
    $region31: #{baseline_forward_prepared.1} parent=1 // pred_check_branch
      %51 = sbr.rel (0) target = $region33
    $region32: #{baseline_forward_prepared.1} parent=1 // pred_region
      %52 = dma.done [#allocation4], 4096
    $region33: #{baseline_forward_prepared.1} parent=1 // pred_fallthru
      _
    // Predicated region
    $region34: #{baseline_forward_prepared.1} parent=1 // pred_check
      _
    $region35: #{baseline_forward_prepared.1} parent=1 // pred_check_branch
      %54 = sbr.rel (0) target = $region37
    $region36: #{baseline_forward_prepared.1} parent=1 // pred_region
      %55 = dma.done [#allocation6], 8192
    $region37: #{baseline_forward_prepared.1} parent=1 // pred_fallthru
      _
    %v56 = vld [vmem:[%s0] sm:$0xff]
    %v57 = vlaneseq
    %v58 = vand.u32 %v57, 127
    %59 = vset.pattern.permute.xlu0 0
    %60 = vperm.xlu0 %59, %v56
    %v61 = vpop.permute.xlu0 %60
    %vm62 = vcmp.eq.s32.totalorder %v58, %v61
    %v63 = vsel %vm62, 1, 0
    %64 = vset.pattern.permute.xlu0 1
    %65 = vperm.xlu0 %64, %v56
    %v66 = vpop.permute.xlu0 %65
    %vm67 = vcmp.eq.s32.totalorder %v58, %v66
    %v68 = vsel %vm67, 1, 0
    %v69 = vadd.s32 %v63, %v68
    %70 = vset.pattern.permute.xlu0 2
    %71 = vperm.xlu0 %70, %v56
    %v72 = vpop.permute.xlu0 %71
    %vm73 = vcmp.eq.s32.totalorder %v58, %v72
    %v74 = vsel %vm73, 1, 0
    %v75 = vadd.s32 %v69, %v74
    %76 = vset.pattern.permute.xlu0 3
    %77 = vperm.xlu0 %76, %v56
    %v78 = vpop.permute.xlu0 %77
    %vm79 = vcmp.eq.s32.totalorder %v58, %v78
    %v80 = vsel %vm79, 1, 0
    %v81 = vadd.s32 %v75, %v80
    %82 = vset.pattern.permute.xlu0 4
    %83 = vperm.xlu0 %82, %v56
    %v84 = vpop.permute.xlu0 %83
    %vm85 = vcmp.eq.s32.totalorder %v58, %v84
    %v86 = vsel %vm85, 1, 0
    %v87 = vadd.s32 %v81, %v86
    %88 = vset.pattern.permute.xlu0 5
    %89 = vperm.xlu0 %88, %v56
    %v90 = vpop.permute.xlu0 %89
    %vm91 = vcmp.eq.s32.totalorder %v58, %v90
    %v92 = vsel %vm91, 1, 0
    %v93 = vadd.s32 %v87, %v92
    %94 = vset.pattern.permute.xlu0 6
    %95 = vperm.xlu0 %94, %v56
    %v96 = vpop.permute.xlu0 %95
    %vm97 = vcmp.eq.s32.totalorder %v58, %v96
    %v98 = vsel %vm97, 1, 0
    %v99 = vadd.s32 %v93, %v98
    %100 = vset.pattern.permute.xlu0 7
    %101 = vperm.xlu0 %100, %v56
    %v102 = vpop.permute.xlu0 %101
    %vm103 = vcmp.eq.s32.totalorder %v58, %v102
    %v104 = vsel %vm103, 1, 0
    %v105 = vadd.s32 %v99, %v104
    %v106 = vcvt.s32.f32 %v105
    %v107 = vmul.f32 %v106, 0.125
    %v108 = vld [vmem:[#allocation3] sm:$0xff]
    %v109 = vld [vmem:[#allocation3 + $0x8] sm:$0xff]
    %v110 = vld [vmem:[#allocation3 + $0x10] sm:$0xff]
    %v111 = vld [vmem:[#allocation3 + $0x18] sm:$0xff]
    %v112 = vld [vmem:[#allocation3 + $0x20] sm:$0xff]
    %v113 = vld [vmem:[#allocation3 + $0x28] sm:$0xff]
    %v114 = vld [vmem:[#allocation3 + $0x30] sm:$0xff]
    %v115 = vld [vmem:[#allocation3 + $0x38] sm:$0xff]
    %v116 = vld [vmem:[#allocation3 + $0x40] sm:$0xff]
    %v117 = vld [vmem:[#allocation3 + $0x48] sm:$0xff]
    %v118 = vld [vmem:[#allocation3 + $0x50] sm:$0xff]
    %v119 = vld [vmem:[#allocation3 + $0x58] sm:$0xff]
    %v120 = vld [vmem:[#allocation3 + $0x60] sm:$0xff]
    %v121 = vld [vmem:[#allocation3 + $0x68] sm:$0xff]
    %v122 = vld [vmem:[#allocation3 + $0x70] sm:$0xff]
    %v123 = vld [vmem:[#allocation3 + $0x78] sm:$0xff]
    %v124 = vld [vmem:[#allocation3 + $0x80] sm:$0xff]
    %v125 = vld [vmem:[#allocation3 + $0x88] sm:$0xff]
    %v126 = vld [vmem:[#allocation3 + $0x90] sm:$0xff]
    %v127 = vld [vmem:[#allocation3 + $0x98] sm:$0xff]
    %v128 = vld [vmem:[#allocation3 + $0xa0] sm:$0xff]
    %v129 = vld [vmem:[#allocation3 + $0xa8] sm:$0xff]
    %v130 = vld [vmem:[#allocation3 + $0xb0] sm:$0xff]
    %v131 = vld [vmem:[#allocation3 + $0xb8] sm:$0xff]
    %v132 = vld [vmem:[#allocation3 + $0xc0] sm:$0xff]
    %v133 = vld [vmem:[#allocation3 + $0xc8] sm:$0xff]
    %v134 = vld [vmem:[#allocation3 + $0xd0] sm:$0xff]
    %v135 = vld [vmem:[#allocation3 + $0xd8] sm:$0xff]
    %v136 = vld [vmem:[#allocation3 + $0xe0] sm:$0xff]
    %v137 = vld [vmem:[#allocation3 + $0xe8] sm:$0xff]
    %v138 = vld [vmem:[#allocation3 + $0xf0] sm:$0xff]
    %v139 = vld [vmem:[#allocation3 + $0xf8] sm:$0xff]
    %v140 = vld [vmem:[%s2] sm:$0x3]
    %v142 = vlaneseq
    %v143 = vshrl.u32 %v142, 7
    %v144 = vsub.s32 0, %v143
    %v145 = vrot.slane %v140, %v144
    %v146 = vlaneseq
    %v147 = vshrl.u32 %v146, 7
    %v148 = vsub.s32 1, %v147
    %v149 = vrot.slane %v140, %v148
    %152 = vmatprep.subr.mxu0 %v139
    %153 = vmatpush1.msra.mxu0 %v138
    %154 = vmatprep.subr.mxu0 %v137
    %155 = vmatpush1.msra.mxu0 %v136
    %156 = vmatprep.subr.mxu0 %v135
    %157 = vmatpush1.msra.mxu0 %v134
    %158 = vmatprep.subr.mxu0 %v133
    %159 = vmatpush1.msra.mxu0 %v132
    %160 = vmatprep.subr.mxu0 %v131
    %161 = vmatpush1.msra.mxu0 %v130
    %162 = vmatprep.subr.mxu0 %v129
    %163 = vmatpush1.msra.mxu0 %v128
    %164 = vmatprep.subr.mxu0 %v127
    %165 = vmatpush1.msra.mxu0 %v126
    %166 = vmatprep.subr.mxu0 %v125
    %167 = vmatpush1.msra.mxu0 %v124
    %168 = vmatprep.subr.mxu0 %v123
    %169 = vmatpush1.msra.mxu0 %v122
    %170 = vmatprep.subr.mxu0 %v121
    %171 = vmatpush1.msra.mxu0 %v120
    %172 = vmatprep.subr.mxu0 %v119
    %173 = vmatpush1.msra.mxu0 %v118
    %174 = vmatprep.subr.mxu0 %v117
    %175 = vmatpush1.msra.mxu0 %v116
    %176 = vmatprep.subr.mxu0 %v115
    %177 = vmatpush1.msra.mxu0 %v114
    %178 = vmatprep.subr.mxu0 %v113
    %179 = vmatpush1.msra.mxu0 %v112
    %180 = vmatprep.subr.mxu0 %v111
    %181 = vmatpush1.msra.mxu0 %v110
    %182 = vmatprep.subr.mxu0 %v109
    %183 = vmatpush1.msra.mxu0 %v108
    %184 = vmatprep.subr.mxu0 0.0
    %185 = vmatpush2.msra.mxu0 0.0
    %186 = vmatprep.subr.mxu0 0.0
    %187 = vmatpush2.msra.mxu0 0.0
    %188 = vmatprep.subr.mxu0 0.0
    %189 = vmatpush2.msra.mxu0 0.0
    %190 = vmatprep.subr.mxu0 0.0
    %191 = vmatpush2.msra.mxu0 0.0
    %192 = vmatprep.subr.mxu0 0.0
    %193 = vmatpush2.msra.mxu0 0.0
    %194 = vmatprep.subr.mxu0 0.0
    %195 = vmatpush2.msra.mxu0 0.0
    %196 = vmatprep.subr.mxu0 0.0
    %197 = vmatpush2.msra.mxu0 0.0
    %198 = vmatprep.subr.mxu0 0.0
    %199 = vmatpush2.msra.mxu0 0.0
    %200 = vmatprep.subr.mxu0 0.0
    %201 = vmatpush2.msra.mxu0 0.0
    %202 = vmatprep.subr.mxu0 0.0
    %203 = vmatpush2.msra.mxu0 0.0
    %204 = vmatprep.subr.mxu0 0.0
    %205 = vmatpush2.msra.mxu0 0.0
    %206 = vmatprep.subr.mxu0 0.0
    %207 = vmatpush2.msra.mxu0 0.0
    %208 = vmatprep.subr.mxu0 0.0
    %209 = vmatpush2.msra.mxu0 0.0
    %210 = vmatprep.subr.mxu0 0.0
    %211 = vmatpush2.msra.mxu0 0.0
    %212 = vmatprep.subr.mxu0 0.0
    %213 = vmatpush2.msra.mxu0 0.0
    %214 = vmatprep.subr.mxu0 0.0
    %215 = vmatpush2.msra.mxu0 0.0
    %216 = vmatprep.mubr.f32.mxu0 0.0
    %217 = vmatmul.mubr.f32.gmra.mxu0 %v107
    %v218 = vpop.f32.mrf.mxu0
    %v219 = vadd.f32 %v145, %v218
    %v220 = vpop.f32.mrf.mxu0
    %v221 = vadd.f32 %v149, %v220
    %222 = vdwg.mxu0
    %v223 = vmax.f32 %v219, 0.0
    %v224 = vmax.f32 %v221, 0.0
    %v225 = vld [vmem:[#allocation5] sm:$0xff]
    %v226 = vld [vmem:[#allocation5 + $0x8] sm:$0xff]
    %v227 = vld [vmem:[#allocation5 + $0x10] sm:$0xff]
    %v228 = vld [vmem:[#allocation5 + $0x18] sm:$0xff]
    %v229 = vld [vmem:[#allocation5 + $0x20] sm:$0xff]
    %v230 = vld [vmem:[#allocation5 + $0x28] sm:$0xff]
    %v231 = vld [vmem:[#allocation5 + $0x30] sm:$0xff]
    %v232 = vld [vmem:[#allocation5 + $0x38] sm:$0xff]
    %v233 = vld [vmem:[#allocation5 + $0x40] sm:$0xff]
    %v234 = vld [vmem:[#allocation5 + $0x48] sm:$0xff]
    %v235 = vld [vmem:[#allocation5 + $0x50] sm:$0xff]
    %v236 = vld [vmem:[#allocation5 + $0x58] sm:$0xff]
    %v237 = vld [vmem:[#allocation5 + $0x60] sm:$0xff]
    %v238 = vld [vmem:[#allocation5 + $0x68] sm:$0xff]
    %v239 = vld [vmem:[#allocation5 + $0x70] sm:$0xff]
    %v240 = vld [vmem:[#allocation5 + $0x78] sm:$0xff]
    %v241 = vld [vmem:[#allocation5 + $0x80] sm:$0xff]
    %v242 = vld [vmem:[#allocation5 + $0x88] sm:$0xff]
    %v243 = vld [vmem:[#allocation5 + $0x90] sm:$0xff]
    %v244 = vld [vmem:[#allocation5 + $0x98] sm:$0xff]
    %v245 = vld [vmem:[#allocation5 + $0xa0] sm:$0xff]
    %v246 = vld [vmem:[#allocation5 + $0xa8] sm:$0xff]
    %v247 = vld [vmem:[#allocation5 + $0xb0] sm:$0xff]
    %v248 = vld [vmem:[#allocation5 + $0xb8] sm:$0xff]
    %v249 = vld [vmem:[#allocation5 + $0xc0] sm:$0xff]
    %v250 = vld [vmem:[#allocation5 + $0xc8] sm:$0xff]
    %v251 = vld [vmem:[#allocation5 + $0xd0] sm:$0xff]
    %v252 = vld [vmem:[#allocation5 + $0xd8] sm:$0xff]
    %v253 = vld [vmem:[#allocation5 + $0xe0] sm:$0xff]
    %v254 = vld [vmem:[#allocation5 + $0xe8] sm:$0xff]
    %v255 = vld [vmem:[#allocation5 + $0xf0] sm:$0xff]
    %v256 = vld [vmem:[#allocation5 + $0xf8] sm:$0xff]
    %v257 = vld [vmem:[#allocation5 + $0x100] sm:$0xff]
    %v258 = vld [vmem:[#allocation5 + $0x108] sm:$0xff]
    %v259 = vld [vmem:[#allocation5 + $0x110] sm:$0xff]
    %v260 = vld [vmem:[#allocation5 + $0x118] sm:$0xff]
    %v261 = vld [vmem:[#allocation5 + $0x120] sm:$0xff]
    %v262 = vld [vmem:[#allocation5 + $0x128] sm:$0xff]
    %v263 = vld [vmem:[#allocation5 + $0x130] sm:$0xff]
    %v264 = vld [vmem:[#allocation5 + $0x138] sm:$0xff]
    %v265 = vld [vmem:[#allocation5 + $0x140] sm:$0xff]
    %v266 = vld [vmem:[#allocation5 + $0x148] sm:$0xff]
    %v267 = vld [vmem:[#allocation5 + $0x150] sm:$0xff]
    %v268 = vld [vmem:[#allocation5 + $0x158] sm:$0xff]
    %v269 = vld [vmem:[#allocation5 + $0x160] sm:$0xff]
    %v270 = vld [vmem:[#allocation5 + $0x168] sm:$0xff]
    %v271 = vld [vmem:[#allocation5 + $0x170] sm:$0xff]
    %v272 = vld [vmem:[#allocation5 + $0x178] sm:$0xff]
    %v273 = vld [vmem:[#allocation5 + $0x180] sm:$0xff]
    %v274 = vld [vmem:[#allocation5 + $0x188] sm:$0xff]
    %v275 = vld [vmem:[#allocation5 + $0x190] sm:$0xff]
    %v276 = vld [vmem:[#allocation5 + $0x198] sm:$0xff]
    %v277 = vld [vmem:[#allocation5 + $0x1a0] sm:$0xff]
    %v278 = vld [vmem:[#allocation5 + $0x1a8] sm:$0xff]
    %v279 = vld [vmem:[#allocation5 + $0x1b0] sm:$0xff]
    %v280 = vld [vmem:[#allocation5 + $0x1b8] sm:$0xff]
    %v281 = vld [vmem:[#allocation5 + $0x1c0] sm:$0xff]
    %v282 = vld [vmem:[#allocation5 + $0x1c8] sm:$0xff]
    %v283 = vld [vmem:[#allocation5 + $0x1d0] sm:$0xff]
    %v284 = vld [vmem:[#allocation5 + $0x1d8] sm:$0xff]
    %v285 = vld [vmem:[#allocation5 + $0x1e0] sm:$0xff]
    %v286 = vld [vmem:[#allocation5 + $0x1e8] sm:$0xff]
    %v287 = vld [vmem:[#allocation5 + $0x1f0] sm:$0xff]
    %v288 = vld [vmem:[#allocation5 + $0x1f8] sm:$0xff]
    %v289 = vld [vmem:[%s4] sm:$0x3]
    %v291 = vlaneseq
    %v292 = vshrl.u32 %v291, 7
    %v293 = vsub.s32 0, %v292
    %v294 = vrot.slane %v289, %v293
    %v295 = vlaneseq
    %v296 = vshrl.u32 %v295, 7
    %v297 = vsub.s32 1, %v296
    %v298 = vrot.slane %v289, %v297
    %301 = vmatprep.subr.mxu0 %v256
    %302 = vmatpush1.msra.mxu0 %v255
    %303 = vmatprep.subr.mxu0 %v254
    %304 = vmatpush1.msra.mxu0 %v253
    %305 = vmatprep.subr.mxu0 %v252
    %306 = vmatpush1.msra.mxu0 %v251
    %307 = vmatprep.subr.mxu0 %v250
    %308 = vmatpush1.msra.mxu0 %v249
    %309 = vmatprep.subr.mxu0 %v248
    %310 = vmatpush1.msra.mxu0 %v247
    %311 = vmatprep.subr.mxu0 %v246
    %312 = vmatpush1.msra.mxu0 %v245
    %313 = vmatprep.subr.mxu0 %v244
    %314 = vmatpush1.msra.mxu0 %v243
    %315 = vmatprep.subr.mxu0 %v242
    %316 = vmatpush1.msra.mxu0 %v241
    %317 = vmatprep.subr.mxu0 %v240
    %318 = vmatpush1.msra.mxu0 %v239
    %319 = vmatprep.subr.mxu0 %v238
    %320 = vmatpush1.msra.mxu0 %v237
    %321 = vmatprep.subr.mxu0 %v236
    %322 = vmatpush1.msra.mxu0 %v235
    %323 = vmatprep.subr.mxu0 %v234
    %324 = vmatpush1.msra.mxu0 %v233
    %325 = vmatprep.subr.mxu0 %v232
    %326 = vmatpush1.msra.mxu0 %v231
    %327 = vmatprep.subr.mxu0 %v230
    %328 = vmatpush1.msra.mxu0 %v229
    %329 = vmatprep.subr.mxu0 %v228
    %330 = vmatpush1.msra.mxu0 %v227
    %331 = vmatprep.subr.mxu0 %v226
    %332 = vmatpush1.msra.mxu0 %v225
    %333 = vmatprep.subr.mxu0 %v288
    %334 = vmatpush2.msra.mxu0 %v287
    %335 = vmatprep.subr.mxu0 %v286
    %336 = vmatpush2.msra.mxu0 %v285
    %337 = vmatprep.subr.mxu0 %v284
    %338 = vmatpush2.msra.mxu0 %v283
    %339 = vmatprep.subr.mxu0 %v282
    %340 = vmatpush2.msra.mxu0 %v281
    %341 = vmatprep.subr.mxu0 %v280
    %342 = vmatpush2.msra.mxu0 %v279
    %343 = vmatprep.subr.mxu0 %v278
    %344 = vmatpush2.msra.mxu0 %v277
    %345 = vmatprep.subr.mxu0 %v276
    %346 = vmatpush2.msra.mxu0 %v275
    %347 = vmatprep.subr.mxu0 %v274
    %348 = vmatpush2.msra.mxu0 %v273
    %349 = vmatprep.subr.mxu0 %v272
    %350 = vmatpush2.msra.mxu0 %v271
    %351 = vmatprep.subr.mxu0 %v270
    %352 = vmatpush2.msra.mxu0 %v269
    %353 = vmatprep.subr.mxu0 %v268
    %354 = vmatpush2.msra.mxu0 %v267
    %355 = vmatprep.subr.mxu0 %v266
    %356 = vmatpush2.msra.mxu0 %v265
    %357 = vmatprep.subr.mxu0 %v264
    %358 = vmatpush2.msra.mxu0 %v263
    %359 = vmatprep.subr.mxu0 %v262
    %360 = vmatpush2.msra.mxu0 %v261
    %361 = vmatprep.subr.mxu0 %v260
    %362 = vmatpush2.msra.mxu0 %v259
    %363 = vmatprep.subr.mxu0 %v258
    %364 = vmatpush2.msra.mxu0 %v257
    %365 = vmatprep.mubr.f32.mxu0 %v224
    %366 = vmatmul.mubr.f32.gmra.mxu0 %v223
    %v367 = vpop.f32.mrf.mxu0
    %v368 = vadd.f32 %v294, %v367
    %v369 = vpop.f32.mrf.mxu0
    %v370 = vadd.f32 %v298, %v369
    %371 = vdwg.mxu0
    %v372 = vmax.f32 %v368, 0.0
    %v373 = vmax.f32 %v370, 0.0
    %v374 = vld [vmem:[%s5] sm:$0x3]
    %v375 = vld [vmem:[#allocation2] sm:$0x1]
    %377 = vset.pattern.permute.xlu0 0
    %378 = vperm.xlu0 %377, %v375
    %v379 = vpop.permute.xlu0 %378
    %v381 = vlaneseq
    %v382 = vshrl.u32 %v381, 7
    %v383 = vsub.s32 0, %v382
    %v384 = vrot.slane %v379, %v383
    %v386 = vlaneseq
    %v387 = vshrl.u32 %v386, 7
    %v388 = vsub.s32 0, %v387
    %v389 = vrot.slane %v374, %v388
    %v390 = vlaneseq
    %v391 = vshrl.u32 %v390, 7
    %v392 = vsub.s32 1, %v391
    %v393 = vrot.slane %v374, %v392
    %396 = vmatprep.subr.mxu0 0.0
    %397 = vmatpush1.xpose.msra.mxu0 0.0
    %398 = vmatprep.subr.mxu0 0.0
    %399 = vmatpush1.xpose.msra.mxu0 0.0
    %400 = vmatprep.subr.mxu0 0.0
    %401 = vmatpush1.xpose.msra.mxu0 0.0
    %402 = vmatprep.subr.mxu0 0.0
    %403 = vmatpush1.xpose.msra.mxu0 0.0
    %404 = vmatprep.subr.mxu0 0.0
    %405 = vmatpush1.xpose.msra.mxu0 0.0
    %406 = vmatprep.subr.mxu0 0.0
    %407 = vmatpush1.xpose.msra.mxu0 0.0
    %408 = vmatprep.subr.mxu0 0.0
    %409 = vmatpush1.xpose.msra.mxu0 0.0
    %410 = vmatprep.subr.mxu0 0.0
    %411 = vmatpush1.xpose.msra.mxu0 0.0
    %412 = vmatprep.subr.mxu0 0.0
    %413 = vmatpush1.xpose.msra.mxu0 0.0
    %414 = vmatprep.subr.mxu0 0.0
    %415 = vmatpush1.xpose.msra.mxu0 0.0
    %416 = vmatprep.subr.mxu0 0.0
    %417 = vmatpush1.xpose.msra.mxu0 0.0
    %418 = vmatprep.subr.mxu0 0.0
    %419 = vmatpush1.xpose.msra.mxu0 0.0
    %420 = vmatprep.subr.mxu0 0.0
    %421 = vmatpush1.xpose.msra.mxu0 0.0
    %422 = vmatprep.subr.mxu0 0.0
    %423 = vmatpush1.xpose.msra.mxu0 0.0
    %424 = vmatprep.subr.mxu0 0.0
    %425 = vmatpush1.xpose.msra.mxu0 0.0
    %426 = vmatprep.subr.mxu0 %v373
    %427 = vmatpush1.xpose.msra.mxu0 %v372
    %428 = vmatprep.subr.mxu0 0.0
    %429 = vmatpush2.xpose.msra.mxu0 0.0
    %430 = vmatprep.subr.mxu0 0.0
    %431 = vmatpush2.xpose.msra.mxu0 0.0
    %432 = vmatprep.subr.mxu0 0.0
    %433 = vmatpush2.xpose.msra.mxu0 0.0
    %434 = vmatprep.subr.mxu0 0.0
    %435 = vmatpush2.xpose.msra.mxu0 0.0
    %436 = vmatprep.subr.mxu0 0.0
    %437 = vmatpush2.xpose.msra.mxu0 0.0
    %438 = vmatprep.subr.mxu0 0.0
    %439 = vmatpush2.xpose.msra.mxu0 0.0
    %440 = vmatprep.subr.mxu0 0.0
    %441 = vmatpush2.xpose.msra.mxu0 0.0
    %442 = vmatprep.subr.mxu0 0.0
    %443 = vmatpush2.xpose.msra.mxu0 0.0
    %444 = vmatprep.subr.mxu0 0.0
    %445 = vmatpush2.xpose.msra.mxu0 0.0
    %446 = vmatprep.subr.mxu0 0.0
    %447 = vmatpush2.xpose.msra.mxu0 0.0
    %448 = vmatprep.subr.mxu0 0.0
    %449 = vmatpush2.xpose.msra.mxu0 0.0
    %450 = vmatprep.subr.mxu0 0.0
    %451 = vmatpush2.xpose.msra.mxu0 0.0
    %452 = vmatprep.subr.mxu0 0.0
    %453 = vmatpush2.xpose.msra.mxu0 0.0
    %454 = vmatprep.subr.mxu0 0.0
    %455 = vmatpush2.xpose.msra.mxu0 0.0
    %456 = vmatprep.subr.mxu0 0.0
    %457 = vmatpush2.xpose.msra.mxu0 0.0
    %458 = vmatprep.subr.mxu0 0.0
    %459 = vmatpush2.xpose.msra.mxu0 0.0
    %460 = vmatprep.mubr.f32.mxu0 %v393
    %461 = vmatmul.mubr.f32.gmra.mxu0 %v389
    %v462 = vpop.f32.mrf.mxu0
    %v463 = vadd.f32 %v384, %v462
    %v464 = vpop.f32.mrf.mxu0
    %465 = vdwg.mxu0
    %vm466 = vcmask 57344
    %467 = vst.msk [vmem:[%s7] sm:$0x1] %vm466, %v463
    // Predicated region
    $region38: #{baseline_forward_prepared.1} parent=1 // pred_check
      _
    $region39: #{baseline_forward_prepared.1} parent=1 // pred_check_branch
      %469 = sbr.rel (0) target = $region41
    $region40: #{baseline_forward_prepared.1} parent=1 // pred_region
      _
    $region41: #{baseline_forward_prepared.1} parent=1 // pred_fallthru
      _
    // Predicated region
    $region42: #{baseline_forward_prepared.1} parent=1 // pred_check
      _
    $region43: #{baseline_forward_prepared.1} parent=1 // pred_check_branch
      %471 = sbr.rel (0) target = $region45
    $region44: #{baseline_forward_prepared.1} parent=1 // pred_region
      _
    $region45: #{baseline_forward_prepared.1} parent=1 // pred_fallthru
      _
    %472 = vsyncpa [#allocation4], 1
    %473 = vsyncpa [#allocation6], 1

</llo_original>
